<compile_context>
chip_gen: v5e
topology: v5e:2x2
jax: 0.10.0
libtpu: 0.0.40
codegen_flags: <defaults>
</compile_context>

<pallas_src>
import functools

import jax
import jax.numpy as jnp
from jax.experimental import pallas as pl
from jax.experimental.pallas import tpu as pltpu

EPS = 1e-5
HPAD = 128          # lane-padded width for the 100 / 50 / 10 feature dims
NEG_BIG = -1e30     # pad value for unused logit lanes (killed by softmax)


def _round_up(n, m):
    return ((n + m - 1) // m) * m


def _row_mask(tile_b, batch):
    """(tile_b, 1) bool mask: True for rows that are real batch rows."""
    rows = jax.lax.broadcasted_iota(jnp.int32, (tile_b, 1), 0)
    return rows + pl.program_id(0) * tile_b < batch


def _accumulate_stats(stats_ref, h, tile_b, batch):
    """stats_ref[0] += sum(h, 0); stats_ref[1] += sum(h*h, 0) (masked rows)."""
    hm = jnp.where(_row_mask(tile_b, batch), h, 0.0)   # select: no NaN leakage
    stats_ref[...] += jnp.concatenate(
        [jnp.sum(hm, axis=0, keepdims=True),
         jnp.sum(hm * hm, axis=0, keepdims=True)], axis=0)


# --------------------------- pass kernels ----------------------------------

def _pass1_kernel(x_ref, w0_ref, b0_ref, h0_ref, stats_ref, *, batch):
    @pl.when(pl.program_id(0) == 0)
    def _init():
        stats_ref[...] = jnp.zeros_like(stats_ref)

    h = jnp.dot(x_ref[...], w0_ref[...],
                preferred_element_type=jnp.float32) + b0_ref[...]
    h0_ref[...] = h
    _accumulate_stats(stats_ref, h, x_ref.shape[0], batch)


def _pass2_kernel(h0_ref, w1_ref, vec_ref, h1_ref, stats_ref, *, batch):
    @pl.when(pl.program_id(0) == 0)
    def _init():
        stats_ref[...] = jnp.zeros_like(stats_ref)

    scale1 = vec_ref[0:1, :]
    shift1 = vec_ref[1:2, :]
    b1 = vec_ref[2:3, :]
    a = jnp.maximum(h0_ref[...] * scale1 + shift1, 0.0)        # BN1 + ReLU (f32)
    h = jnp.dot(a.astype(w1_ref.dtype), w1_ref[...],
                preferred_element_type=jnp.float32) + b1
    h1_ref[...] = h
    _accumulate_stats(stats_ref, h, h0_ref.shape[0], batch)


def _pass3_kernel(h1_ref, w2_ref, vec_ref, out_ref):
    scale2 = vec_ref[0:1, :]
    shift2 = vec_ref[1:2, :]
    b2 = vec_ref[2:3, :]                                        # pad lanes = -1e30
    a = jnp.maximum(h1_ref[...] * scale2 + shift2, 0.0)         # BN2 + ReLU (f32)
    logits = jnp.dot(a.astype(w2_ref.dtype), w2_ref[...],
                     preferred_element_type=jnp.float32) + b2
    m = jnp.max(logits, axis=1, keepdims=True)
    z = logits - m
    lse = jnp.log(jnp.sum(jnp.exp(z), axis=1, keepdims=True))
    out_ref[...] = (z - lse)[:, :out_ref.shape[1]].astype(out_ref.dtype)


# --------------------------- wrapper ----------------------------------------

def _bn_scale_shift(stats, gamma, beta, batch):
    """Fold training-mode BN (biased variance, eps) into a per-feature affine."""
    mean = stats[0] / batch
    var = jnp.maximum(stats[1] / batch - mean * mean, 0.0)
    inv = jax.lax.rsqrt(var + EPS)
    scale = gamma[0] * inv
    shift = beta[0] - mean * scale
    return scale, shift


def model4_forward(x, params, *, compute_dtype=jnp.bfloat16, tile_b=512):
    """Forward pass of Model4.  x: (B, image_size) float32."""
    B, D = x.shape
    tb = int(min(tile_b, _round_up(B, 8)))
    grid = (pl.cdiv(B, tb),)

    resident = lambda i: (0, 0)      # params stay VMEM-resident across the grid
    batched = lambda i: (i, 0)       # activations stream over the batch grid

    xc = x.astype(compute_dtype)
    w0 = params["w0"].astype(compute_dtype)
    w1 = params["w1"].astype(compute_dtype)
    w2 = params["w2"].astype(compute_dtype)

    # At tile_b<=1024 and these widths, the default 32 MiB scoped VMEM is ample
    # on all generations; raise pltpu.CompilerParams(vmem_limit_bytes=...) only
    # if tile_b is pushed much higher (and re-derive for v7x's 64 MiB VMEM).
    arb = pltpu.CompilerParams(dimension_semantics=("arbitrary",))
    par = pltpu.CompilerParams(dimension_semantics=("parallel",))

    # ---- pass 1: fc0, accumulate BN1 batch statistics ----------------------
    h0, stats1 = pl.pallas_call(
        functools.partial(_pass1_kernel, batch=B),
        grid=grid,
        in_specs=[pl.BlockSpec((tb, D), batched),
                  pl.BlockSpec((D, HPAD), resident),
                  pl.BlockSpec((1, HPAD), resident)],
        out_specs=(pl.BlockSpec((tb, HPAD), batched),
                   pl.BlockSpec((2, HPAD), resident)),
        out_shape=(jax.ShapeDtypeStruct((B, HPAD), jnp.float32),
                   jax.ShapeDtypeStruct((2, HPAD), jnp.float32)),
        compiler_params=arb,
    )(xc, w0, params["b0"])

    scale1, shift1 = _bn_scale_shift(stats1, params["g1"], params["be1"], B)
    vec2 = jnp.stack([scale1, shift1, params["b1"][0]], axis=0)      # (3, 128)

    # ---- pass 2: BN1 -> ReLU -> fc1, accumulate BN2 batch statistics -------
    h1, stats2 = pl.pallas_call(
        functools.partial(_pass2_kernel, batch=B),
        grid=grid,
        in_specs=[pl.BlockSpec((tb, HPAD), batched),
                  pl.BlockSpec((HPAD, HPAD), resident),
                  pl.BlockSpec((3, HPAD), resident)],
        out_specs=(pl.BlockSpec((tb, HPAD), batched),
                   pl.BlockSpec((2, HPAD), resident)),
        out_shape=(jax.ShapeDtypeStruct((B, HPAD), jnp.float32),
                   jax.ShapeDtypeStruct((2, HPAD), jnp.float32)),
        compiler_params=arb,
    )(h0, w1, vec2)

    scale2, shift2 = _bn_scale_shift(stats2, params["g2"], params["be2"], B)
    lane = jnp.arange(HPAD)
    b2m = jnp.where(lane < 10, params["b2"][0], jnp.float32(NEG_BIG))
    vec3 = jnp.stack([scale2, shift2, b2m], axis=0)                  # (3, 128)

    # ---- pass 3: BN2 -> ReLU -> fc2 -> log_softmax --------------------------
    out = pl.pallas_call(
        _pass3_kernel,
        grid=grid,
        in_specs=[pl.BlockSpec((tb, HPAD), batched),
                  pl.BlockSpec((HPAD, HPAD), resident),
                  pl.BlockSpec((3, HPAD), resident)],
        out_specs=pl.BlockSpec((tb, 10), batched),
        out_shape=jax.ShapeDtypeStruct((B, 10), jnp.float32),
        compiler_params=par,
    )(h1, w2, vec3)
    return out


# --------------------------- params / reference -----------------------------

def init_params(key, image_size):
    """PyTorch-style init (U(+-1/sqrt(fan_in))); weights stored [in, out] and
    pre-padded to 128 lanes with zeros.  Padding is inert: zero weight columns
    -> zero pre-activations, zero gamma -> zero post-BN, zero weight rows ->
    no downstream contribution, so the first 10 logits are unchanged."""
    def linear(k, fan_in, fan_out):
        kw, kb = jax.random.split(k)
        bound = 1.0 / float(fan_in) ** 0.5
        w = jax.random.uniform(kw, (fan_in, fan_out), jnp.float32, -bound, bound)
        b = jax.random.uniform(kb, (fan_out,), jnp.float32, -bound, bound)
        return w, b

    def pad2(w, rows, cols):
        return jnp.zeros((rows, cols), jnp.float32).at[:w.shape[0], :w.shape[1]].set(w)

    def pad1(v, cols):
        return jnp.zeros((1, cols), jnp.float32).at[0, :v.shape[0]].set(v)

    k0, k1, k2 = jax.random.split(key, 3)
    w0, b0 = linear(k0, image_size, 100)
    w1, b1 = linear(k1, 100, 50)
    w2, b2 = linear(k2, 50, 10)
    return {
        "w0": pad2(w0, image_size, HPAD), "b0": pad1(b0, HPAD),
        "g1": pad1(jnp.ones((100,), jnp.float32), HPAD),
        "be1": pad1(jnp.zeros((100,), jnp.float32), HPAD),
        "w1": pad2(w1, HPAD, HPAD), "b1": pad1(b1, HPAD),
        "g2": pad1(jnp.ones((50,), jnp.float32), HPAD),
        "be2": pad1(jnp.zeros((50,), jnp.float32), HPAD),
        "w2": pad2(w2, HPAD, HPAD), "b2": pad1(b2, HPAD),
    }


def model4_reference(x, p):
    """Pure-JAX f32 reference, faithful to PyTorch Model4 in training mode
    (batch statistics, biased variance, eps=1e-5)."""
    def bn(h, g, b):
        mu = jnp.mean(h, axis=0, keepdims=True)
        var = jnp.mean((h - mu) ** 2, axis=0, keepdims=True)
        return (h - mu) * jax.lax.rsqrt(var + EPS) * g + b

    h = x @ p["w0"] + p["b0"]
    h = jnp.maximum(bn(h, p["g1"], p["be1"]), 0.0)
    h = h @ p["w1"] + p["b1"]
    h = jnp.maximum(bn(h, p["g2"], p["be2"]), 0.0)
    logits = (h @ p["w2"] + p["b2"])[:, :10]
    return jax.nn.log_softmax(logits, axis=1)


if __name__ == "__main__":
    image_size = 64     # flattened 8x8 "image"
    batch = 8

    key = jax.random.PRNGKey(0)
    kx, kp = jax.random.split(key)

    # Input shaped like an image batch (B, 1, 8, 8); forward flattens it.
    x_img = jax.random.normal(kx, (batch, 1, 8, 8), jnp.float32)
    x = x_img.reshape(-1, image_size)

    params = init_params(kp, image_size)
    ref = model4_reference(x, params)

    # f32 streams: bit-level faithful to the PyTorch math.
    out_f32 = jax.block_until_ready(
        model4_forward(x, params, compute_dtype=jnp.float32))
    assert out_f32.shape == (batch, 10)
    assert jnp.allclose(out_f32, ref, atol=1e-4, rtol=1e-4), \
        float(jnp.max(jnp.abs(out_f32 - ref)))

    # Default bf16 x / weight streams (f32 accumulation, f32 BN & softmax).
    out_bf16 = jax.block_until_ready(model4_forward(x, params))
    assert out_bf16.shape == (batch, 10)
    assert jnp.allclose(out_bf16, ref, atol=5e-2, rtol=5e-2), \
        float(jnp.max(jnp.abs(out_bf16 - ref)))

    print("KERNEL_OK")
</pallas_src>

<mosaic_0001>
module attributes {stable_mosaic.version = 11 : i64} {
  func.func @_pass1_kernel(%arg0: i32, %arg1: memref<8x64xf32, #tpu.memory_space<vmem>>, %arg2: memref<64x128xf32, #tpu.memory_space<vmem>>, %arg3: memref<1x128xf32, #tpu.memory_space<vmem>>, %arg4: memref<8x128xf32, #tpu.memory_space<vmem>>, %arg5: memref<2x128xf32, #tpu.memory_space<vmem>>) attributes {dimension_semantics = [#tpu.dimension_semantics<arbitrary>], iteration_bounds = array<i64: 1>, scalar_prefetch = 0 : i64, scratch_operands = 0 : i64, tpu.core_type = #tpu.core_type<tc>, window_params = [{transform_indices = @transform_0, window_bounds = array<i64: 8, 64>}, {pipeline_mode = #tpu.pipeline_mode<synchronous>, transform_indices = @transform_1, window_bounds = array<i64: 64, 128>}, {pipeline_mode = #tpu.pipeline_mode<synchronous>, transform_indices = @transform_2, window_bounds = array<i64: 1, 128>}, {transform_indices = @transform_3, window_bounds = array<i64: 8, 128>}, {pipeline_mode = #tpu.pipeline_mode<synchronous>, transform_indices = @transform_4, window_bounds = array<i64: 2, 128>}]} {
    %c0_i32 = arith.constant 0 : i32
    %0 = arith.cmpi eq, %arg0, %c0_i32 : i32
    %1 = arith.extui %0 : i1 to i32
    %c0_i32_0 = arith.constant 0 : i32
    %2 = arith.cmpi ne, %1, %c0_i32_0 : i32
    scf.if %2 {
      %cst_16 = arith.constant 0.000000e+00 : f32
      %29 = vector.broadcast %cst_16 : f32 to vector<2x128xf32>
      %c0_17 = arith.constant 0 : index
      %c0_18 = arith.constant 0 : index
      %30 = vector.load %arg5[%c0_17, %c0_18] : memref<2x128xf32, #tpu.memory_space<vmem>>, vector<2x128xf32>
      tpu.vector_store %arg5[%c0_17, %c0_18], %29 {strides = array<i32>} : memref<2x128xf32, #tpu.memory_space<vmem>>, vector<2x128xf32>,
    } else {
    }
    %c0 = arith.constant 0 : index
    %c0_1 = arith.constant 0 : index
    %3 = vector.load %arg1[%c0, %c0_1] : memref<8x64xf32, #tpu.memory_space<vmem>>, vector<8x64xf32>
    %c0_2 = arith.constant 0 : index
    %c0_3 = arith.constant 0 : index
    %4 = vector.load %arg2[%c0_2, %c0_3] : memref<64x128xf32, #tpu.memory_space<vmem>>, vector<64x128xf32>
    %cst = arith.constant dense<0.000000e+00> : vector<8x128xf32>
    %5 = tpu.matmul %3, %4, %cst {dimension_numbers = #tpu.dot_dimension_numbers<[1], [0], [0], [1], [0, 0, 1, 1], [], []>} : vector<8x64xf32>, vector<64x128xf32>, vector<8x128xf32> -> vector<8x128xf32>
    %c0_4 = arith.constant 0 : index
    %c0_5 = arith.constant 0 : index
    %6 = vector.load %arg3[%c0_4, %c0_5] : memref<1x128xf32, #tpu.memory_space<vmem>>, vector<1x128xf32>
    %7 = vector.broadcast %6 : vector<1x128xf32> to vector<8x128xf32>
    %8 = arith.addf %5, %7 : vector<8x128xf32>
    %c0_6 = arith.constant 0 : index
    %c0_7 = arith.constant 0 : index
    %9 = vector.load %arg4[%c0_6, %c0_7] : memref<8x128xf32, #tpu.memory_space<vmem>>, vector<8x128xf32>
    tpu.vector_store %arg4[%c0_6, %c0_7], %8 {strides = array<i32>} : memref<8x128xf32, #tpu.memory_space<vmem>>, vector<8x128xf32>,
    %10 = tpu.iota {dimensions = array<i32: 0>} : vector<8x1xi32>
    %c8_i32 = arith.constant 8 : i32
    %11 = arith.muli %arg0, %c8_i32 : i32
    %12 = vector.broadcast %11 : i32 to vector<8x1xi32>
    %13 = arith.addi %10, %12 : vector<8x1xi32>
    %c8_i32_8 = arith.constant 8 : i32
    %14 = vector.broadcast %c8_i32_8 : i32 to vector<8x1xi32>
    %15 = arith.cmpi slt, %13, %14 : vector<8x1xi32>
    %cst_9 = arith.constant 0.000000e+00 : f32
    %16 = vector.shape_cast %15 : vector<8x1xi1> to vector<8x1xi1>
    %17 = vector.broadcast %16 : vector<8x1xi1> to vector<8x128xi1>
    %18 = vector.broadcast %cst_9 : f32 to vector<8x128xf32>
    %19 = arith.select %17, %8, %18 : vector<8x128xi1>, vector<8x128xf32>
    %c0_10 = arith.constant 0 : index
    %c0_11 = arith.constant 0 : index
    %20 = vector.load %arg5[%c0_10, %c0_11] : memref<2x128xf32, #tpu.memory_space<vmem>>, vector<2x128xf32>
    %cst_12 = arith.constant dense<0.000000e+00> : vector<128xf32>
    %21 = vector.multi_reduction <add>, %19, %cst_12 [0] : vector<8x128xf32> to vector<128xf32>
    %22 = vector.shape_cast %21 : vector<128xf32> to vector<1x128xf32>
    %23 = arith.mulf %19, %19 : vector<8x128xf32>
    %cst_13 = arith.constant dense<0.000000e+00> : vector<128xf32>
    %24 = vector.multi_reduction <add>, %23, %cst_13 [0] : vector<8x128xf32> to vector<128xf32>
    %25 = vector.shape_cast %24 : vector<128xf32> to vector<1x128xf32>
    %26 = tpu.concatenate %22, %25 in 0 : vector<1x128xf32>, vector<1x128xf32> -> vector<2x128xf32>
    %27 = arith.addf %20, %26 : vector<2x128xf32>
    %c0_14 = arith.constant 0 : index
    %c0_15 = arith.constant 0 : index
    %28 = vector.load %arg5[%c0_14, %c0_15] : memref<2x128xf32, #tpu.memory_space<vmem>>, vector<2x128xf32>
    tpu.vector_store %arg5[%c0_14, %c0_15], %27 {strides = array<i32>} : memref<2x128xf32, #tpu.memory_space<vmem>>, vector<2x128xf32>,
    return
  }
  func.func @transform_0(%arg0: i32) -> (i32, i32) {
    %c0_i32 = arith.constant 0 : i32
    %c0_i32_0 = arith.constant 0 : i32
    return %arg0, %c0_i32 : i32, i32
  }
  func.func @transform_1(%arg0: i32) -> (i32, i32) {
    %c0_i32 = arith.constant 0 : i32
    %c0_i32_0 = arith.constant 0 : i32
    %c0_i32_1 = arith.constant 0 : i32
    return %c0_i32, %c0_i32_0 : i32, i32
  }
  func.func @transform_2(%arg0: i32) -> (i32, i32) {
    %c0_i32 = arith.constant 0 : i32
    %c0_i32_0 = arith.constant 0 : i32
    %c0_i32_1 = arith.constant 0 : i32
    return %c0_i32, %c0_i32_0 : i32, i32
  }
  func.func @transform_3(%arg0: i32) -> (i32, i32) {
    %c0_i32 = arith.constant 0 : i32
    %c0_i32_0 = arith.constant 0 : i32
    return %arg0, %c0_i32 : i32, i32
  }
  func.func @transform_4(%arg0: i32) -> (i32, i32) {
    %c0_i32 = arith.constant 0 : i32
    %c0_i32_0 = arith.constant 0 : i32
    %c0_i32_1 = arith.constant 0 : i32
    return %c0_i32, %c0_i32_0 : i32, i32
  }
}

</mosaic_0001>

<llo_original>
// kernel: tpu_custom_call.1
$region0: #{tpu_custom_call.1}
  #allocation0 [shape = 'u32[]', space=smem, size = 0x4, offset = 0x4, fixed_abs, tag = 'smem constant byte address 0x4 - core index']
  #allocation1 [shape = 'u32[72,128]{1,0:T(1,128)}', space=vmem, size = 0x9000, scoped, tag = 'internal scratch']
  %s0 = inlined_call_operand.hbm [shape: f32[8,64], index: 0, kind: input, shape index: {}]
  %s1 = inlined_call_operand.hbm [shape: f32[64,128], index: 1, kind: input, shape index: {}]
  %s2 = inlined_call_operand.vmem [shape: f32[1,128], index: 2, kind: input, shape index: {}]
  %s3 = inlined_call_operand.hbm [shape: f32[8,128], index: 3, kind: output, shape index: {0}]
  %s4 = inlined_call_operand.hbm [shape: f32[2,128], index: 4, kind: output, shape index: {1}]
  %5 = xla_tuple %s3, %s4
  %s6 = sld [smem:[#allocation0]]
  $region42: #{tpu_custom_call.1} parent=0
    _
  %s8 = ssub.s32 1, %s6
  %s9 = scalar_select 0, %s8, %s6
  $region1: #{tpu_custom_call.1} parent=0
    #allocation2 [shape = 'u8[4096]{0}', space=vmem, size = 0x1000, scoped, tag = 'input window, operand 0, single buffered']
    #allocation3 [shape = 's32[1]{0}', space=sflag, size = 0x4, scoped, tag = 'scoped memory for tpu_custom_call.1']
    #allocation4 [shape = 's32[1]{0}', space=sflag, size = 0x4, scoped, tag = 'scoped memory for tpu_custom_call.1']
    #allocation5 [shape = 'u8[32768]{0}', space=vmem, size = 0x8000, scoped, tag = 'input window, operand 1, single buffered']
    #allocation6 [shape = 's32[1]{0}', space=sflag, size = 0x4, scoped, tag = 'scoped memory for tpu_custom_call.1']
    #allocation7 [shape = 'u8[4096]{0}', space=vmem, size = 0x1000, scoped, tag = 'output window, operand 0, single buffered']
    #allocation8 [shape = 'u8[1024]{0}', space=vmem, size = 0x400, scoped, tag = 'output window, operand 1, single buffered']
    #allocation9 [shape = 's32[1]{0}', space=sflag, size = 0x4, scoped, tag = 'scoped memory for tpu_custom_call.1']
    %10 = vsyncpa [#allocation3], 0
    %11 = vsyncpa [#allocation6], 0
    %12 = vsyncpa [#allocation4], 0
    %13 = vsyncpa [#allocation9], 0
    // Predicated region
    $region2: #{tpu_custom_call.1} parent=1 // pred_check
      _
    $region3: #{tpu_custom_call.1} parent=1 // pred_check_branch
      %15 = sbr.rel (0) target = $region5
    $region4: #{tpu_custom_call.1} parent=1 // pred_region
      %17 = vsyncadd [#allocation3], 0
      %s19 = sshll.u32 %s0, 4
      %s20 = int_to_ptr.hbm [resolvable:$true] %s19
      %s21 = sshll.u32 [#allocation2], 4
      %s22 = int_to_ptr.vmem [resolvable:$true] %s21
      %24 = dma.hbm_to_vmem [thread:$0]  %s20, 128, %s22, [#allocation3]
    $region5: #{tpu_custom_call.1} parent=1 // pred_fallthru
      _
    // Predicated region
    $region6: #{tpu_custom_call.1} parent=1 // pred_check
      _
    $region7: #{tpu_custom_call.1} parent=1 // pred_check_branch
      %26 = sbr.rel (0) target = $region9
    $region8: #{tpu_custom_call.1} parent=1 // pred_region
      %28 = vsyncadd [#allocation6], 0
      %s29 = sshll.u32 %s1, 4
      %s30 = int_to_ptr.hbm [resolvable:$true] %s29
      %s31 = sshll.u32 [#allocation5], 4
      %s32 = int_to_ptr.vmem [resolvable:$true] %s31
      %37 = dma.hbm_to_vmem [thread:$0]  %s30, 1024, %s32, [#allocation6], 128, 128, 8
    $region9: #{tpu_custom_call.1} parent=1 // pred_fallthru
      _
    // Predicated region
    $region10: #{tpu_custom_call.1} parent=1 // pred_check
      _
    $region11: #{tpu_custom_call.1} parent=1 // pred_check_branch
      %39 = sbr.rel (0) target = $region13
    $region12: #{tpu_custom_call.1} parent=1 // pred_region
      _
    $region13: #{tpu_custom_call.1} parent=1 // pred_fallthru
      _
    // Predicated region
    $region14: #{tpu_custom_call.1} parent=1 // pred_check
      _
    $region15: #{tpu_custom_call.1} parent=1 // pred_check_branch
      %41 = sbr.rel (0) target = $region17
    $region16: #{tpu_custom_call.1} parent=1 // pred_region
      %43 = dma.done [#allocation3], 128
    $region17: #{tpu_custom_call.1} parent=1 // pred_fallthru
      _
    // Predicated region
    $region18: #{tpu_custom_call.1} parent=1 // pred_check
      _
    $region19: #{tpu_custom_call.1} parent=1 // pred_check_branch
      %45 = sbr.rel (0) target = $region21
    $region20: #{tpu_custom_call.1} parent=1 // pred_region
      %47 = dma.done [#allocation6], 1024
    $region21: #{tpu_custom_call.1} parent=1 // pred_fallthru
      _
    %p48 = scmp.eq.s32.totalorder 0, 0
    // Predicated region
    $region22: #{tpu_custom_call.1} parent=1 // pred_check
      %p49 = pneg %p48
    $region23: #{tpu_custom_call.1} parent=1 // pred_check_branch
      %51 = sbr.rel (%p49) target = $region25
    $region24: #{tpu_custom_call.1} parent=1 // pred_region
      %52 = vst [vmem:[#allocation8] sm:$0x3] 0.0
    $region25: #{tpu_custom_call.1} parent=1 // pred_fallthru
      _
    %v53 = vld [vmem:[#allocation2] sm:$0xff]
    %v54 = vld [vmem:[#allocation5] sm:$0xff]
    %v55 = vld [vmem:[#allocation5 + $0x8] sm:$0xff]
    %v56 = vld [vmem:[#allocation5 + $0x10] sm:$0xff]
    %v57 = vld [vmem:[#allocation5 + $0x18] sm:$0xff]
    %v58 = vld [vmem:[#allocation5 + $0x20] sm:$0xff]
    %v59 = vld [vmem:[#allocation5 + $0x28] sm:$0xff]
    %v60 = vld [vmem:[#allocation5 + $0x30] sm:$0xff]
    %v61 = vld [vmem:[#allocation5 + $0x38] sm:$0xff]
    %v62 = vld [vmem:[%s2] sm:$0x1]
    %v64 = vperm.slane %v62, 0
    %vm66 = vcmask 523264
    %v68 = vsel %vm66, %v53, 0
    %70 = vmatpush.msra.mxu0 0.0
    %71 = vmatpush.msra.mxu0 0.0
    %72 = vmatpush.msra.mxu0 0.0
    %73 = vmatpush.msra.mxu0 0.0
    %74 = vmatpush.msra.mxu0 0.0
    %75 = vmatpush.msra.mxu0 0.0
    %76 = vmatpush.msra.mxu0 0.0
    %77 = vmatpush.msra.mxu0 0.0
    %78 = vmatpush.msra.mxu0 %v61
    %79 = vmatpush.msra.mxu0 %v60
    %80 = vmatpush.msra.mxu0 %v59
    %81 = vmatpush.msra.mxu0 %v58
    %82 = vmatpush.msra.mxu0 %v57
    %83 = vmatpush.msra.mxu0 %v56
    %84 = vmatpush.msra.mxu0 %v55
    %85 = vmatpush.msra.mxu0 %v54
    %86 = vmatmul.f32.gmra.mxu0 %v68
    %v87 = vpop.f32.mrf.mxu0
    %v88 = vadd.f32 %v64, %v87
    %89 = vdwg.mxu0
    %90 = vst [vmem:[#allocation7] sm:$0xff] %v88
    %v91 = vlaneseq
    %v92 = vshrl.u32 %v91, 7
    %s93 = smul.u32 0, 8
    %v94 = vstv %s93
    %v95 = vadd.s32 %v92, %v94
    %vm96 = vcmp.lt.s32.totalorder %v95, 8
    %v97 = vsel %vm96, 1, 0
    %vm98 = vcmp.eq.s32.totalorder %v97, 1
    %v99 = vsel %vm98, %v88, 0.0
    %v100 = vld [vmem:[#allocation8] sm:$0x3]
    %v101 = vrot.slane %v99, 4
    %v102 = vadd.f32 %v99, %v101
    %v103 = vrot.slane %v102, 2
    %v104 = vadd.f32 %v102, %v103
    %v105 = vrot.slane %v104, 1
    %v106 = vadd.f32 %v104, %v105
    %v107 = vmul.f32 %v99, %v99
    %v108 = vrot.slane %v107, 4
    %v109 = vadd.f32 %v107, %v108
    %v110 = vrot.slane %v109, 2
    %v111 = vadd.f32 %v109, %v110
    %v112 = vrot.slane %v111, 1
    %v113 = vadd.f32 %v111, %v112
    %vm114 = vcmask 1040384
    %v115 = vsel %vm114, %v106, %v113
    %v116 = vadd.f32 %v100, %v115
    %117 = vst [vmem:[#allocation8] sm:$0x3] %v116
    // Predicated region
    $region26: #{tpu_custom_call.1} parent=1 // pred_check
      _
    $region27: #{tpu_custom_call.1} parent=1 // pred_check_branch
      %119 = sbr.rel (0) target = $region29
    $region28: #{tpu_custom_call.1} parent=1 // pred_region
      %121 = vsyncadd [#allocation4], 0
      %s123 = sshll.u32 [#allocation7], 4
      %s124 = int_to_ptr.vmem [resolvable:$true] %s123
      %s125 = sshll.u32 %s3, 4
      %s126 = int_to_ptr.hbm [resolvable:$true] %s125
      %128 = dma.vmem_to_hbm [thread:$0]  %s124, 128, %s126, [#allocation4]
    $region29: #{tpu_custom_call.1} parent=1 // pred_fallthru
      _
    // Predicated region
    $region30: #{tpu_custom_call.1} parent=1 // pred_check
      _
    $region31: #{tpu_custom_call.1} parent=1 // pred_check_branch
      %130 = sbr.rel (0) target = $region33
    $region32: #{tpu_custom_call.1} parent=1 // pred_region
      %132 = vsyncadd [#allocation9], 0
      %s134 = sshll.u32 [#allocation8], 4
      %s135 = int_to_ptr.vmem [resolvable:$true] %s134
      %s136 = sshll.u32 %s4, 4
      %s137 = int_to_ptr.hbm [resolvable:$true] %s136
      %139 = dma.vmem_to_hbm [thread:$0]  %s135, 32, %s137, [#allocation9]
    $region33: #{tpu_custom_call.1} parent=1 // pred_fallthru
      _
    // Predicated region
    $region34: #{tpu_custom_call.1} parent=1 // pred_check
      _
    $region35: #{tpu_custom_call.1} parent=1 // pred_check_branch
      %141 = sbr.rel (0) target = $region37
    $region36: #{tpu_custom_call.1} parent=1 // pred_region
      %143 = dma.done [#allocation4], 128
    $region37: #{tpu_custom_call.1} parent=1 // pred_fallthru
      _
    // Predicated region
    $region38: #{tpu_custom_call.1} parent=1 // pred_check
      _
    $region39: #{tpu_custom_call.1} parent=1 // pred_check_branch
      %145 = sbr.rel (0) target = $region41
    $region40: #{tpu_custom_call.1} parent=1 // pred_region
      %147 = dma.done [#allocation9], 32
    $region41: #{tpu_custom_call.1} parent=1 // pred_fallthru
      _
    %148 = vsyncpa [#allocation3], 1
    %149 = vsyncpa [#allocation6], 1
    %150 = vsyncpa [#allocation4], 1
    %151 = vsyncpa [#allocation9], 1

</llo_original>
